<compile_context>
chip_gen: v5e
topology: v5e:2x2
jax: 0.10.0
libtpu: 0.0.40
codegen_flags: <defaults>
</compile_context>

<pallas_src>
import functools

import jax
import jax.numpy as jnp
from jax.experimental import pallas as pl
from jax.experimental.pallas import tpu as pltpu


def _round_up(x, m):
    return ((x + m - 1) // m) * m


def _vmem_capacity_bytes():
    try:
        return int(pltpu.get_tpu_info().vmem_capacity_bytes)
    except Exception:
        return 64 << 20  # conservative (v7x-sized) fallback


def _vmem_budget_bytes():
    cap = _vmem_capacity_bytes()
    if cap >= (100 << 20):
        # v5e / v6e: 128 MiB per TensorCore -> use most of it, keep headroom.
        return cap - (24 << 20)
    # v7x: 64 MiB per TensorCore -> leave headroom for compiler temporaries.
    return max(min(cap - (12 << 20), 52 << 20), 32 << 20)


def _working_set_bytes(tm, th, dim, out_bytes):
    """Single-counted VMEM working set for one grid step (incl. double buffers)."""
    x_tile = 2 * tm * dim * 2               # bf16 x tile, double-buffered
    w13_slab = 2 * dim * (2 * th) * 2       # fused gate/up slab, double-buffered
    w2_slab = 2 * th * dim * 2              # down-proj slab, double-buffered
    out_tile = 2 * tm * dim * out_bytes     # output tile, double-buffered
    acc = tm * dim * 4                      # f32 accumulator scratch
    # compiler-managed intermediates: h13 (f32), gated (f32 + bf16), dot result
    interm = tm * (2 * th) * 4 + tm * th * 4 + tm * th * 2 + tm * dim * 4
    return x_tile + w13_slab + w2_slab + out_tile + acc + interm


def _select_th(dim, hidden, budget):
    th = 512 if _vmem_capacity_bytes() >= (100 << 20) else 256
    th = min(th, _round_up(hidden, 128))
    while th > 128 and _working_set_bytes(256, th, dim, 4) > budget:
        th = max(128, _round_up(th // 2, 128))
    return th


def _select_tm(M, dim, th, out_bytes, budget):
    tm = 1024 if _vmem_capacity_bytes() >= (100 << 20) else 512
    tm = min(tm, _round_up(M, 8))
    while tm > 8 and _working_set_bytes(tm, th, dim, out_bytes) > budget:
        tm = max(8, _round_up(tm // 2, 8))
    return tm


def _ffn_kernel(x_ref, w13_ref, w2_ref, o_ref, acc_ref, *, th):
    # grid = (M//tm, hidden_pad//th); axis 1 (hidden) is the reduction axis.
    # x_ref:   (tm, dim)     bf16
    # w13_ref: (dim, 2*th)   bf16  [w1 block | w3 block] for this hidden tile
    # w2_ref:  (th, dim)     bf16  down-proj slab
    # o_ref:   (tm, dim)     output dtype
    # acc_ref: (tm, dim)     f32 accumulator scratch
    h = pl.program_id(1)

    @pl.when(h == 0)
    def _():
        acc_ref[...] = jnp.zeros_like(acc_ref)

    x = x_ref[...]
    # One fused MXU dot for gate + up projections.
    h13 = jnp.dot(x, w13_ref[...], preferred_element_type=jnp.float32)  # (tm, 2*th)
    h1 = h13[:, :th]
    h3 = h13[:, th:]
    # SwiGLU gate in f32 on VPU/EUP (co-issues with MXU pushes).
    gated = (h1 * jax.nn.sigmoid(h1)) * h3
    acc_ref[...] += jnp.dot(gated.astype(w2_ref.dtype), w2_ref[...],
                            preferred_element_type=jnp.float32)

    @pl.when(h == pl.num_programs(1) - 1)
    def _():
        o_ref[...] = acc_ref[...].astype(o_ref.dtype)


@functools.partial(jax.jit, static_argnames=("tm", "th", "out_dtype"))
def _ffn_call(x2d, w13, w2p, *, tm, th, out_dtype):
    M, dim = x2d.shape
    hidden_pad = w2p.shape[0]
    n_h = hidden_pad // th
    grid = (pl.cdiv(M, tm), n_h)
    out_bytes = jnp.dtype(out_dtype).itemsize

    # Cost estimate: 3 matmuls + one sigmoid per gated element; weights are
    # re-streamed once per row tile.
    n_row_tiles = grid[0]
    flops = 6 * M * dim * hidden_pad
    bytes_accessed = (M * dim * 2
                      + n_row_tiles * (3 * dim * hidden_pad * 2)
                      + M * dim * out_bytes)
    cost = pl.CostEstimate(flops=flops, transcendentals=M * hidden_pad,
                           bytes_accessed=bytes_accessed)

    kernel = functools.partial(_ffn_kernel, th=th)
    return pl.pallas_call(
        kernel,
        out_shape=jax.ShapeDtypeStruct((M, dim), out_dtype),
        grid_spec=pltpu.PrefetchScalarGridSpec(
            num_scalar_prefetch=0,
            grid=grid,
            in_specs=[
                pl.BlockSpec((tm, dim), lambda i, h: (i, 0)),       # x tile
                pl.BlockSpec((dim, 2 * th), lambda i, h: (0, h)),   # fused w1|w3
                pl.BlockSpec((th, dim), lambda i, h: (h, 0)),       # w2 slab
            ],
            out_specs=pl.BlockSpec((tm, dim), lambda i, h: (i, 0)),
            scratch_shapes=[pltpu.VMEM((tm, dim), jnp.float32)],
        ),
        compiler_params=pltpu.CompilerParams(
            dimension_semantics=("parallel", "arbitrary"),
            vmem_limit_bytes=_vmem_budget_bytes()),
        cost_estimate=cost,
    )(x2d.astype(jnp.bfloat16), w13, w2p)


def make_feed_forward(w1, w3, w2, *, out_dtype=None):
    """One-time (init-time) weight prep; returns apply(x) for x (batch, seq, dim).

    w1, w3: (dim, hidden)  gate / up projections (math layout, = Linear.weight.T)
    w2:     (hidden, dim)  down projection
    """
    dim, hidden = w1.shape
    budget = _vmem_budget_bytes()
    th = _select_th(dim, hidden, budget)
    hidden_pad = _round_up(hidden, th)
    pad = hidden_pad - hidden

    # Zero-pad hidden (numerically inert for SwiGLU) and cast to bf16 ONCE.
    w1p = jnp.pad(w1, ((0, 0), (0, pad))).astype(jnp.bfloat16)
    w3p = jnp.pad(w3, ((0, 0), (0, pad))).astype(jnp.bfloat16)
    w2p = jnp.pad(w2, ((0, pad), (0, 0))).astype(jnp.bfloat16)

    # Interleave per-hidden-tile blocks so each (dim, 2*th) grid slab holds
    # [w1 block | w3 block] for the same hidden indices.
    n_h = hidden_pad // th
    w13 = jnp.concatenate(
        [w1p.reshape(dim, n_h, th), w3p.reshape(dim, n_h, th)], axis=-1
    ).reshape(dim, n_h * 2 * th)
    w13 = jax.device_put(w13)
    w2p = jax.device_put(w2p)

    def apply(x):
        batch, seq, d = x.shape
        assert d == dim, "input feature dim mismatch"
        M = batch * seq
        odt = jnp.dtype(out_dtype if out_dtype is not None else x.dtype)
        tm = _select_tm(M, dim, th, odt.itemsize, budget)
        # NOTE: for v7x decode shapes (M <= tm) the second TensorCore idles;
        # splitting the hidden axis across cores via core_map would recover it.
        out2d = _ffn_call(x.reshape(M, dim), w13, w2p, tm=tm, th=th, out_dtype=odt)
        return out2d.reshape(batch, seq, dim)

    return apply


def _reference(x, w1, w3, w2):
    h1 = x @ w1
    h3 = x @ w3
    return (h1 * jax.nn.sigmoid(h1) * h3) @ w2


if __name__ == "__main__":
    # Module hyperparams (small, but respecting the hidden_dim rounding logic).
    dim = 128
    hidden_dim_arg = 256
    multiple_of = 128
    hidden_dim = int(2 * hidden_dim_arg / 3)                                     # 170
    hidden_dim = multiple_of * ((hidden_dim + multiple_of - 1) // multiple_of)   # 256

    batch, seq = 2, 8

    key = jax.random.PRNGKey(0)
    kx, k1, k2, k3 = jax.random.split(key, 4)

    x = jax.random.normal(kx, (batch, seq, dim), dtype=jnp.float32)
    # Deterministic init mimicking nn.Linear default scale, stored transposed
    # as (in, out).
    w1 = jax.random.uniform(k1, (dim, hidden_dim), dtype=jnp.float32,
                            minval=-1.0, maxval=1.0) / jnp.sqrt(dim)
    w3 = jax.random.uniform(k3, (dim, hidden_dim), dtype=jnp.float32,
                            minval=-1.0, maxval=1.0) / jnp.sqrt(dim)
    w2 = jax.random.uniform(k2, (hidden_dim, dim), dtype=jnp.float32,
                            minval=-1.0, maxval=1.0) / jnp.sqrt(hidden_dim)

    # Init-time weight prep (bf16 cast / fusion / padding happen once here).
    ffn = make_feed_forward(w1, w3, w2)

    out = ffn(x)
    out = jax.block_until_ready(out)

    # Reference in f32 with the same bf16-quantized operands the kernel feeds
    # the MXU (kernel accumulates in f32; tolerance covers the bf16 cast of
    # the gated intermediate before the w2 matmul).
    xb = x.astype(jnp.bfloat16).astype(jnp.float32)
    w1f = w1.astype(jnp.bfloat16).astype(jnp.float32)
    w3f = w3.astype(jnp.bfloat16).astype(jnp.float32)
    w2f = w2.astype(jnp.bfloat16).astype(jnp.float32)
    ref = _reference(xb, w1f, w3f, w2f)

    assert out.shape == (batch, seq, dim)
    assert jnp.allclose(out, ref, atol=2e-2, rtol=2e-2), "mismatch vs reference"

    print("KERNEL_OK")
</pallas_src>

<mosaic_0001>
module attributes {stable_mosaic.version = 11 : i64} {
  func.func @_ffn_kernel(%arg0: i32, %arg1: i32, %arg2: memref<16x128xbf16, #tpu.memory_space<vmem>>, %arg3: memref<128x512xbf16, #tpu.memory_space<vmem>>, %arg4: memref<256x128xbf16, #tpu.memory_space<vmem>>, %arg5: memref<16x128xf32, #tpu.memory_space<vmem>>, %arg6: memref<16x128xf32, #tpu.memory_space<vmem>>) attributes {dimension_semantics = [#tpu.dimension_semantics<parallel>, #tpu.dimension_semantics<arbitrary>], iteration_bounds = array<i64: 1, 1>, scalar_prefetch = 0 : i64, scratch_operands = 1 : i64, tpu.core_type = #tpu.core_type<tc>, window_params = [{transform_indices = @transform_0, window_bounds = array<i64: 16, 128>}, {transform_indices = @transform_1, window_bounds = array<i64: 128, 512>}, {transform_indices = @transform_2, window_bounds = array<i64: 256, 128>}, {transform_indices = @transform_3, window_bounds = array<i64: 16, 128>}]} {
    %c0_i32 = arith.constant 0 : i32
    %0 = arith.cmpi eq, %arg1, %c0_i32 : i32
    %1 = arith.extui %0 : i1 to i32
    %c0_i32_0 = arith.constant 0 : i32
    %2 = arith.cmpi ne, %1, %c0_i32_0 : i32
    scf.if %2 {
      %cst_14 = arith.constant 0.000000e+00 : f32
      %24 = vector.broadcast %cst_14 : f32 to vector<16x128xf32>
      %c0_15 = arith.constant 0 : index
      %c0_16 = arith.constant 0 : index
      %25 = vector.load %arg6[%c0_15, %c0_16] : memref<16x128xf32, #tpu.memory_space<vmem>>, vector<16x128xf32>
      tpu.vector_store %arg6[%c0_15, %c0_16], %24 {strides = array<i32>} : memref<16x128xf32, #tpu.memory_space<vmem>>, vector<16x128xf32>,
    } else {
    }
    %c0 = arith.constant 0 : index
    %c0_1 = arith.constant 0 : index
    %3 = vector.load %arg2[%c0, %c0_1] : memref<16x128xbf16, #tpu.memory_space<vmem>>, vector<16x128xbf16>
    %c0_2 = arith.constant 0 : index
    %c0_3 = arith.constant 0 : index
    %4 = vector.load %arg3[%c0_2, %c0_3] : memref<128x512xbf16, #tpu.memory_space<vmem>>, vector<128x512xbf16>
    %cst = arith.constant dense<0.000000e+00> : vector<16x512xf32>
    %5 = tpu.matmul %3, %4, %cst {dimension_numbers = #tpu.dot_dimension_numbers<[1], [0], [0], [1], [0, 0, 1, 1], [], []>} : vector<16x128xbf16>, vector<128x512xbf16>, vector<16x512xf32> -> vector<16x512xf32>
    %6 = vector.extract_strided_slice %5 {offsets = [0, 0], sizes = [16, 256], strides = [1, 1]} : vector<16x512xf32> to vector<16x256xf32>
    %7 = vector.extract_strided_slice %5 {offsets = [0, 256], sizes = [16, 256], strides = [1, 1]} : vector<16x512xf32> to vector<16x256xf32>
    %8 = arith.negf %6 : vector<16x256xf32>
    %9 = math.exp %8 : vector<16x256xf32>
    %cst_4 = arith.constant 1.000000e+00 : f32
    %10 = vector.broadcast %cst_4 : f32 to vector<16x256xf32>
    %11 = arith.addf %10, %9 : vector<16x256xf32>
    %12 = arith.divf %10, %11 : vector<16x256xf32>
    %13 = arith.mulf %6, %12 : vector<16x256xf32>
    %14 = arith.mulf %13, %7 : vector<16x256xf32>
    %c0_5 = arith.constant 0 : index
    %c0_6 = arith.constant 0 : index
    %15 = vector.load %arg6[%c0_5, %c0_6] : memref<16x128xf32, #tpu.memory_space<vmem>>, vector<16x128xf32>
    %16 = arith.truncf %14 : vector<16x256xf32> to vector<16x256xbf16>
    %c0_7 = arith.constant 0 : index
    %c0_8 = arith.constant 0 : index
    %17 = vector.load %arg4[%c0_7, %c0_8] : memref<256x128xbf16, #tpu.memory_space<vmem>>, vector<256x128xbf16>
    %cst_9 = arith.constant dense<0.000000e+00> : vector<16x128xf32>
    %18 = tpu.matmul %16, %17, %cst_9 {dimension_numbers = #tpu.dot_dimension_numbers<[1], [0], [0], [1], [0, 0, 1, 1], [], []>} : vector<16x256xbf16>, vector<256x128xbf16>, vector<16x128xf32> -> vector<16x128xf32>
    %19 = arith.addf %15, %18 : vector<16x128xf32>
    %c0_10 = arith.constant 0 : index
    %c0_11 = arith.constant 0 : index
    %20 = vector.load %arg6[%c0_10, %c0_11] : memref<16x128xf32, #tpu.memory_space<vmem>>, vector<16x128xf32>
    tpu.vector_store %arg6[%c0_10, %c0_11], %19 {strides = array<i32>} : memref<16x128xf32, #tpu.memory_space<vmem>>, vector<16x128xf32>,
    %c0_i32_12 = arith.constant 0 : i32
    %21 = arith.cmpi eq, %arg1, %c0_i32_12 : i32
    %22 = arith.extui %21 : i1 to i32
    %c0_i32_13 = arith.constant 0 : i32
    %23 = arith.cmpi ne, %22, %c0_i32_13 : i32
    scf.if %23 {
      %c0_14 = arith.constant 0 : index
      %c0_15 = arith.constant 0 : index
      %24 = vector.load %arg6[%c0_14, %c0_15] : memref<16x128xf32, #tpu.memory_space<vmem>>, vector<16x128xf32>
      %c0_16 = arith.constant 0 : index
      %c0_17 = arith.constant 0 : index
      %25 = vector.load %arg5[%c0_16, %c0_17] : memref<16x128xf32, #tpu.memory_space<vmem>>, vector<16x128xf32>
      tpu.vector_store %arg5[%c0_16, %c0_17], %24 {strides = array<i32>} : memref<16x128xf32, #tpu.memory_space<vmem>>, vector<16x128xf32>,
    } else {
    }
    return
  }
  func.func @transform_0(%arg0: i32, %arg1: i32) -> (i32, i32) {
    %c0_i32 = arith.constant 0 : i32
    %c0_i32_0 = arith.constant 0 : i32
    return %arg0, %c0_i32 : i32, i32
  }
  func.func @transform_1(%arg0: i32, %arg1: i32) -> (i32, i32) {
    %c0_i32 = arith.constant 0 : i32
    %c0_i32_0 = arith.constant 0 : i32
    return %c0_i32, %arg1 : i32, i32
  }
  func.func @transform_2(%arg0: i32, %arg1: i32) -> (i32, i32) {
    %c0_i32 = arith.constant 0 : i32
    %c0_i32_0 = arith.constant 0 : i32
    return %arg1, %c0_i32 : i32, i32
  }
  func.func @transform_3(%arg0: i32, %arg1: i32) -> (i32, i32) {
    %c0_i32 = arith.constant 0 : i32
    %c0_i32_0 = arith.constant 0 : i32
    return %arg0, %c0_i32 : i32, i32
  }
}

</mosaic_0001>

<llo_original>
// kernel: _ffn_call.1
$region0: #{_ffn_call.1}
  #allocation0 [shape = 'u32[]', space=smem, size = 0x4, offset = 0x4, fixed_abs, tag = 'smem constant byte address 0x4 - core index']
  #allocation1 [shape = 'u32[72,128]{1,0:T(1,128)}', space=vmem, size = 0x9000, scoped, tag = 'internal scratch']
  #allocation2 [shape = 'f32[16,128]{1,0:T(8,128)}', space=vmem, size = 0x2000, scoped, tag = 'scratch operand']
  %s0 = inlined_call_operand.vmem [shape: bf16[16,128], index: 0, kind: input, shape index: {}]
  %s1 = inlined_call_operand.hbm [shape: bf16[128,512], index: 1, kind: input, shape index: {}]
  %s2 = inlined_call_operand.hbm [shape: bf16[256,128], index: 2, kind: input, shape index: {}]
  %s3 = inlined_call_operand.hbm [shape: f32[16,128], index: 3, kind: output, shape index: {}]
  %s4 = sld [smem:[#allocation0]]
  $region38: #{_ffn_call.1} parent=0
    _
  %s6 = ssub.s32 1, %s4
  %s7 = scalar_select 0, %s6, %s4
  $region1: #{_ffn_call.1} parent=0
    #allocation3 [shape = 'u8[131072]{0}', space=vmem, size = 0x20000, scoped, tag = 'input window, operand 1, single buffered']
    #allocation4 [shape = 's32[1]{0}', space=sflag, size = 0x4, scoped, tag = 'scoped memory for _ffn_call.1']
    #allocation5 [shape = 's32[1]{0}', space=sflag, size = 0x4, scoped, tag = 'scoped memory for _ffn_call.1']
    #allocation6 [shape = 'u8[65536]{0}', space=vmem, size = 0x10000, scoped, tag = 'input window, operand 2, single buffered']
    #allocation7 [shape = 's32[1]{0}', space=sflag, size = 0x4, scoped, tag = 'scoped memory for _ffn_call.1']
    #allocation8 [shape = 'u8[8192]{0}', space=vmem, size = 0x2000, scoped, tag = 'output window, operand 0, single buffered']
    %8 = vsyncpa [#allocation4], 0
    %9 = vsyncpa [#allocation7], 0
    %10 = vsyncpa [#allocation5], 0
    // Predicated region
    $region2: #{_ffn_call.1} parent=1 // pred_check
      _
    $region3: #{_ffn_call.1} parent=1 // pred_check_branch
      %12 = sbr.rel (0) target = $region5
    $region4: #{_ffn_call.1} parent=1 // pred_region
      _
    $region5: #{_ffn_call.1} parent=1 // pred_fallthru
      _
    // Predicated region
    $region6: #{_ffn_call.1} parent=1 // pred_check
      _
    $region7: #{_ffn_call.1} parent=1 // pred_check_branch
      %14 = sbr.rel (0) target = $region9
    $region8: #{_ffn_call.1} parent=1 // pred_region
      %16 = vsyncadd [#allocation4], 0
      %s17 = sshll.u32 %s1, 4
      %s18 = int_to_ptr.hbm [resolvable:$true] %s17
      %s19 = sshll.u32 [#allocation3], 4
      %s20 = int_to_ptr.vmem [resolvable:$true] %s19
      %25 = dma.hbm_to_vmem [thread:$0]  %s18, 4096, %s20, [#allocation4], 256, 256, 16
    $region9: #{_ffn_call.1} parent=1 // pred_fallthru
      _
    // Predicated region
    $region10: #{_ffn_call.1} parent=1 // pred_check
      _
    $region11: #{_ffn_call.1} parent=1 // pred_check_branch
      %27 = sbr.rel (0) target = $region13
    $region12: #{_ffn_call.1} parent=1 // pred_region
      %29 = vsyncadd [#allocation7], 0
      %s30 = sshll.u32 %s2, 4
      %s31 = int_to_ptr.hbm [resolvable:$true] %s30
      %s32 = sshll.u32 [#allocation6], 4
      %s33 = int_to_ptr.vmem [resolvable:$true] %s32
      %38 = dma.hbm_to_vmem [thread:$0]  %s31, 2048, %s33, [#allocation7], 64, 64, 4
    $region13: #{_ffn_call.1} parent=1 // pred_fallthru
      _
    // Predicated region
    $region14: #{_ffn_call.1} parent=1 // pred_check
      _
    $region15: #{_ffn_call.1} parent=1 // pred_check_branch
      %40 = sbr.rel (0) target = $region17
    $region16: #{_ffn_call.1} parent=1 // pred_region
      %42 = dma.done [#allocation4], 4096
    $region17: #{_ffn_call.1} parent=1 // pred_fallthru
      _
    // Predicated region
    $region18: #{_ffn_call.1} parent=1 // pred_check
      _
    $region19: #{_ffn_call.1} parent=1 // pred_check_branch
      %44 = sbr.rel (0) target = $region21
    $region20: #{_ffn_call.1} parent=1 // pred_region
      %46 = dma.done [#allocation7], 2048
    $region21: #{_ffn_call.1} parent=1 // pred_fallthru
      _
    %p47 = scmp.eq.s32.totalorder 0, 0
    // Predicated region
    $region22: #{_ffn_call.1} parent=1 // pred_check
      %p48 = pneg %p47
    $region23: #{_ffn_call.1} parent=1 // pred_check_branch
      %50 = sbr.rel (%p48) target = $region25
    $region24: #{_ffn_call.1} parent=1 // pred_region
      %51 = vst [vmem:[#allocation2] sm:$0xff] 0.0
      %52 = vst [vmem:[#allocation2 + $0x8] sm:$0xff] 0.0
    $region25: #{_ffn_call.1} parent=1 // pred_fallthru
      _
    %v53 = vld [vmem:[%s0] sm:$0xf]
    %v54 = vld [vmem:[%s0 + $0x4] sm:$0xf]
    %v55 = vld [vmem:[#allocation3] sm:$0xff]
    %v56 = vld [vmem:[#allocation3 + $0x8] sm:$0xff]
    %v57 = vld [vmem:[#allocation3 + $0x10] sm:$0xff]
    %v58 = vld [vmem:[#allocation3 + $0x18] sm:$0xff]
    %v59 = vld [vmem:[#allocation3 + $0x20] sm:$0xff]
    %v60 = vld [vmem:[#allocation3 + $0x28] sm:$0xff]
    %v61 = vld [vmem:[#allocation3 + $0x30] sm:$0xff]
    %v62 = vld [vmem:[#allocation3 + $0x38] sm:$0xff]
    %v63 = vld [vmem:[#allocation3 + $0x40] sm:$0xff]
    %v64 = vld [vmem:[#allocation3 + $0x48] sm:$0xff]
    %v65 = vld [vmem:[#allocation3 + $0x50] sm:$0xff]
    %v66 = vld [vmem:[#allocation3 + $0x58] sm:$0xff]
    %v67 = vld [vmem:[#allocation3 + $0x60] sm:$0xff]
    %v68 = vld [vmem:[#allocation3 + $0x68] sm:$0xff]
    %v69 = vld [vmem:[#allocation3 + $0x70] sm:$0xff]
    %v70 = vld [vmem:[#allocation3 + $0x78] sm:$0xff]
    %v71 = vld [vmem:[#allocation3 + $0x80] sm:$0xff]
    %v72 = vld [vmem:[#allocation3 + $0x88] sm:$0xff]
    %v73 = vld [vmem:[#allocation3 + $0x90] sm:$0xff]
    %v74 = vld [vmem:[#allocation3 + $0x98] sm:$0xff]
    %v75 = vld [vmem:[#allocation3 + $0xa0] sm:$0xff]
    %v76 = vld [vmem:[#allocation3 + $0xa8] sm:$0xff]
    %v77 = vld [vmem:[#allocation3 + $0xb0] sm:$0xff]
    %v78 = vld [vmem:[#allocation3 + $0xb8] sm:$0xff]
    %v79 = vld [vmem:[#allocation3 + $0xc0] sm:$0xff]
    %v80 = vld [vmem:[#allocation3 + $0xc8] sm:$0xff]
    %v81 = vld [vmem:[#allocation3 + $0xd0] sm:$0xff]
    %v82 = vld [vmem:[#allocation3 + $0xd8] sm:$0xff]
    %v83 = vld [vmem:[#allocation3 + $0xe0] sm:$0xff]
    %v84 = vld [vmem:[#allocation3 + $0xe8] sm:$0xff]
    %v85 = vld [vmem:[#allocation3 + $0xf0] sm:$0xff]
    %v86 = vld [vmem:[#allocation3 + $0xf8] sm:$0xff]
    %v89 = vunpack.c.l.b16 %v53
    %v90 = vunpack.c.l.b16 %v54
    %v91 = vpack.c.b16 %v90, %v89
    %v125 = vunpack.c.l.b16 %v55
    %v126 = vunpack.c.h.b16 %v55
    %v127 = vunpack.c.l.b16 %v56
    %v128 = vunpack.c.h.b16 %v56
    %v129 = vunpack.c.l.b16 %v57
    %v130 = vunpack.c.h.b16 %v57
    %v131 = vunpack.c.l.b16 %v58
    %v132 = vunpack.c.h.b16 %v58
    %v133 = vunpack.c.l.b16 %v59
    %v134 = vunpack.c.h.b16 %v59
    %v135 = vunpack.c.l.b16 %v60
    %v136 = vunpack.c.h.b16 %v60
    %v137 = vunpack.c.l.b16 %v61
    %v138 = vunpack.c.h.b16 %v61
    %v139 = vunpack.c.l.b16 %v62
    %v140 = vunpack.c.h.b16 %v62
    %v141 = vunpack.c.l.b16 %v63
    %v142 = vunpack.c.h.b16 %v63
    %v143 = vunpack.c.l.b16 %v64
    %v144 = vunpack.c.h.b16 %v64
    %v145 = vunpack.c.l.b16 %v65
    %v146 = vunpack.c.h.b16 %v65
    %v147 = vunpack.c.l.b16 %v66
    %v148 = vunpack.c.h.b16 %v66
    %v149 = vunpack.c.l.b16 %v67
    %v150 = vunpack.c.h.b16 %v67
    %v151 = vunpack.c.l.b16 %v68
    %v152 = vunpack.c.h.b16 %v68
    %v153 = vunpack.c.l.b16 %v69
    %v154 = vunpack.c.h.b16 %v69
    %v155 = vunpack.c.l.b16 %v70
    %v156 = vunpack.c.h.b16 %v70
    %v157 = vunpack.c.l.b16 %v71
    %v158 = vunpack.c.h.b16 %v71
    %v159 = vunpack.c.l.b16 %v72
    %v160 = vunpack.c.h.b16 %v72
    %v161 = vunpack.c.l.b16 %v73
    %v162 = vunpack.c.h.b16 %v73
    %v163 = vunpack.c.l.b16 %v74
    %v164 = vunpack.c.h.b16 %v74
    %v165 = vunpack.c.l.b16 %v75
    %v166 = vunpack.c.h.b16 %v75
    %v167 = vunpack.c.l.b16 %v76
    %v168 = vunpack.c.h.b16 %v76
    %v169 = vunpack.c.l.b16 %v77
    %v170 = vunpack.c.h.b16 %v77
    %v171 = vunpack.c.l.b16 %v78
    %v172 = vunpack.c.h.b16 %v78
    %v173 = vunpack.c.l.b16 %v79
    %v174 = vunpack.c.h.b16 %v79
    %v175 = vunpack.c.l.b16 %v80
    %v176 = vunpack.c.h.b16 %v80
    %v177 = vunpack.c.l.b16 %v81
    %v178 = vunpack.c.h.b16 %v81
    %v179 = vunpack.c.l.b16 %v82
    %v180 = vunpack.c.h.b16 %v82
    %v181 = vunpack.c.l.b16 %v83
    %v182 = vunpack.c.h.b16 %v83
    %v183 = vunpack.c.l.b16 %v84
    %v184 = vunpack.c.h.b16 %v84
    %v185 = vunpack.c.l.b16 %v85
    %v186 = vunpack.c.h.b16 %v85
    %v187 = vunpack.c.l.b16 %v86
    %v188 = vunpack.c.h.b16 %v86
    %v189 = vpack.c.b16 %v129, %v125
    %v190 = vpack.c.b16 %v130, %v126
    %v191 = vpack.c.b16 %v131, %v127
    %v192 = vpack.c.b16 %v132, %v128
    %v193 = vpack.c.b16 %v137, %v133
    %v194 = vpack.c.b16 %v138, %v134
    %v195 = vpack.c.b16 %v139, %v135
    %v196 = vpack.c.b16 %v140, %v136
    %v197 = vpack.c.b16 %v145, %v141
    %v198 = vpack.c.b16 %v146, %v142
    %v199 = vpack.c.b16 %v147, %v143
    %v200 = vpack.c.b16 %v148, %v144
    %v201 = vpack.c.b16 %v153, %v149
    %v202 = vpack.c.b16 %v154, %v150
    %v203 = vpack.c.b16 %v155, %v151
    %v204 = vpack.c.b16 %v156, %v152
    %v205 = vpack.c.b16 %v161, %v157
    %v206 = vpack.c.b16 %v162, %v158
    %v207 = vpack.c.b16 %v163, %v159
    %v208 = vpack.c.b16 %v164, %v160
    %v209 = vpack.c.b16 %v169, %v165
    %v210 = vpack.c.b16 %v170, %v166
    %v211 = vpack.c.b16 %v171, %v167
    %v212 = vpack.c.b16 %v172, %v168
    %v213 = vpack.c.b16 %v177, %v173
    %v214 = vpack.c.b16 %v178, %v174
    %v215 = vpack.c.b16 %v179, %v175
    %v216 = vpack.c.b16 %v180, %v176
    %v217 = vpack.c.b16 %v185, %v181
    %v218 = vpack.c.b16 %v186, %v182
    %v219 = vpack.c.b16 %v187, %v183
    %v220 = vpack.c.b16 %v188, %v184
    %253 = vmatpush.bf16.msra.mxu0 %v217
    %254 = vmatpush.bf16.msra.mxu0 %v213
    %255 = vmatpush.bf16.msra.mxu0 %v209
    %256 = vmatpush.bf16.msra.mxu0 %v205
    %257 = vmatpush.bf16.msra.mxu0 %v201
    %258 = vmatpush.bf16.msra.mxu0 %v197
    %259 = vmatpush.bf16.msra.mxu0 %v193
    %260 = vmatpush.bf16.msra.mxu0 %v189
    %261 = vmatmul.bf16.gmra.mxu0 %v91
    %v262 = vpop.f32.mrf.mxu0
    %v263 = vadd.f32 0.0, %v262
    %v264 = vpop.f32.mrf.mxu0
    %v265 = vadd.f32 0.0, %v264
    %266 = vdwg.mxu0
    %267 = vmatpush.bf16.msra.mxu0 %v218
    %268 = vmatpush.bf16.msra.mxu0 %v214
    %269 = vmatpush.bf16.msra.mxu0 %v210
    %270 = vmatpush.bf16.msra.mxu0 %v206
    %271 = vmatpush.bf16.msra.mxu0 %v202
    %272 = vmatpush.bf16.msra.mxu0 %v198
    %273 = vmatpush.bf16.msra.mxu0 %v194
    %274 = vmatpush.bf16.msra.mxu0 %v190
    %275 = vmatmul.bf16.gmra.mxu0 %v91
    %v276 = vpop.f32.mrf.mxu0
    %v277 = vadd.f32 0.0, %v276
    %v278 = vpop.f32.mrf.mxu0
    %v279 = vadd.f32 0.0, %v278
    %280 = vdwg.mxu0
    %281 = vmatpush.bf16.msra.mxu0 %v219
    %282 = vmatpush.bf16.msra.mxu0 %v215
    %283 = vmatpush.bf16.msra.mxu0 %v211
    %284 = vmatpush.bf16.msra.mxu0 %v207
    %285 = vmatpush.bf16.msra.mxu0 %v203
    %286 = vmatpush.bf16.msra.mxu0 %v199
    %287 = vmatpush.bf16.msra.mxu0 %v195
    %288 = vmatpush.bf16.msra.mxu0 %v191
    %289 = vmatmul.bf16.gmra.mxu0 %v91
    %v290 = vpop.f32.mrf.mxu0
    %v291 = vadd.f32 0.0, %v290
    %v292 = vpop.f32.mrf.mxu0
    %v293 = vadd.f32 0.0, %v292
    %294 = vdwg.mxu0
    %295 = vmatpush.bf16.msra.mxu0 %v220
    %296 = vmatpush.bf16.msra.mxu0 %v216
    %297 = vmatpush.bf16.msra.mxu0 %v212
    %298 = vmatpush.bf16.msra.mxu0 %v208
    %299 = vmatpush.bf16.msra.mxu0 %v204
    %300 = vmatpush.bf16.msra.mxu0 %v200
    %301 = vmatpush.bf16.msra.mxu0 %v196
    %302 = vmatpush.bf16.msra.mxu0 %v192
    %303 = vmatmul.bf16.gmra.mxu0 %v91
    %v304 = vpop.f32.mrf.mxu0
    %v305 = vadd.f32 0.0, %v304
    %v306 = vpop.f32.mrf.mxu0
    %v307 = vadd.f32 0.0, %v306
    %308 = vdwg.mxu0
    %v309 = vxor.u32 %v263, 2147483648
    %v310 = vxor.u32 %v277, 2147483648
    %v311 = vxor.u32 %v265, 2147483648
    %v312 = vxor.u32 %v279, 2147483648
    %v313 = vmul.f32 %v309, 1.442695
    %v314 = vpow.pop %v313
    %v315 = vmul.f32 %v310, 1.442695
    %v316 = vpow.pop %v315
    %v317 = vmul.f32 %v311, 1.442695
    %v318 = vpow.pop %v317
    %v319 = vmul.f32 %v312, 1.442695
    %v320 = vpow.pop %v319
    %v321 = vadd.f32 %v314, 1.0
    %v322 = vadd.f32 %v316, 1.0
    %v323 = vadd.f32 %v318, 1.0
    %v324 = vadd.f32 %v320, 1.0
    %v325 = vrcp.pop %v321
    %v326 = vmul.f32 %v321, %v325
    %v327 = vsub.f32 1.0, %v326
    %v328 = vmul.f32 %v325, %v327
    %v329 = vadd.f32 %v325, %v328
    %vm330 = vweird.f32 %v321
    %vm331 = vweird.f32 %v325
    %vm332 = vmor %vm330, %vm331
    %v333 = vsel %vm332, %v325, %v329
    %v334 = vand.u32 2147483647, %v321
    %vm335 = vcmp.eq.f32.partialorder %v334, 8.507059e+37
    %v336 = vand.u32 %v321, 2147483648
    %v337 = vor.u32 1.1754944e-38, %v336
    %v338 = vsel %vm335, %v337, %v333
    %v339 = vmul.f32 1.0, %v338
    %v340 = vrcp.pop %v322
    %v341 = vmul.f32 %v322, %v340
    %v342 = vsub.f32 1.0, %v341
    %v343 = vmul.f32 %v340, %v342
    %v344 = vadd.f32 %v340, %v343
    %vm345 = vweird.f32 %v322
    %vm346 = vweird.f32 %v340
    %vm347 = vmor %vm345, %vm346
    %v348 = vsel %vm347, %v340, %v344
    %v349 = vand.u32 2147483647, %v322
    %vm350 = vcmp.eq.f32.partialorder %v349, 8.507059e+37
    %v351 = vand.u32 %v322, 2147483648
    %v352 = vor.u32 1.1754944e-38, %v351
    %v353 = vsel %vm350, %v352, %v348
    %v354 = vmul.f32 1.0, %v353
    %v355 = vrcp.pop %v323
    %v356 = vmul.f32 %v323, %v355
    %v357 = vsub.f32 1.0, %v356
    %v358 = vmul.f32 %v355, %v357
    %v359 = vadd.f32 %v355, %v358
    %vm360 = vweird.f32 %v323
    %vm361 = vweird.f32 %v355
    %vm362 = vmor %vm360, %vm361
    %v363 = vsel %vm362, %v355, %v359
    %v364 = vand.u32 2147483647, %v323
    %vm365 = vcmp.eq.f32.partialorder %v364, 8.507059e+37
    %v366 = vand.u32 %v323, 2147483648
    %v367 = vor.u32 1.1754944e-38, %v366
    %v368 = vsel %vm365, %v367, %v363
    %v369 = vmul.f32 1.0, %v368
    %v370 = vrcp.pop %v324
    %v371 = vmul.f32 %v324, %v370
    %v372 = vsub.f32 1.0, %v371
    %v373 = vmul.f32 %v370, %v372
    %v374 = vadd.f32 %v370, %v373
    %vm375 = vweird.f32 %v324
    %vm376 = vweird.f32 %v370
    %vm377 = vmor %vm375, %vm376
    %v378 = vsel %vm377, %v370, %v374
    %v379 = vand.u32 2147483647, %v324
    %vm380 = vcmp.eq.f32.partialorder %v379, 8.507059e+37
    %v381 = vand.u32 %v324, 2147483648
    %v382 = vor.u32 1.1754944e-38, %v381
    %v383 = vsel %vm380, %v382, %v378
    %v384 = vmul.f32 1.0, %v383
    %v385 = vmul.f32 %v263, %v339
    %v386 = vmul.f32 %v277, %v354
    %v387 = vmul.f32 %v265, %v369
    %v388 = vmul.f32 %v279, %v384
    %v389 = vmul.f32 %v385, %v291
    %v390 = vmul.f32 %v386, %v305
    %v391 = vmul.f32 %v387, %v293
    %v392 = vmul.f32 %v388, %v307
    %v393 = vld [vmem:[#allocation2] sm:$0xff]
    %v394 = vld [vmem:[#allocation2 + $0x8] sm:$0xff]
    %v395 = vpack.c.bf16 %v391, %v389
    %v396 = vpack.c.bf16 %v392, %v390
    %v397 = vld [vmem:[#allocation6] sm:$0xf]
    %v398 = vld [vmem:[#allocation6 + $0x4] sm:$0xf]
    %v399 = vld [vmem:[#allocation6 + $0x8] sm:$0xf]
    %v400 = vld [vmem:[#allocation6 + $0xc] sm:$0xf]
    %v401 = vld [vmem:[#allocation6 + $0x10] sm:$0xf]
    %v402 = vld [vmem:[#allocation6 + $0x14] sm:$0xf]
    %v403 = vld [vmem:[#allocation6 + $0x18] sm:$0xf]
    %v404 = vld [vmem:[#allocation6 + $0x1c] sm:$0xf]
    %v405 = vld [vmem:[#allocation6 + $0x20] sm:$0xf]
    %v406 = vld [vmem:[#allocation6 + $0x24] sm:$0xf]
    %v407 = vld [vmem:[#allocation6 + $0x28] sm:$0xf]
    %v408 = vld [vmem:[#allocation6 + $0x2c] sm:$0xf]
    %v409 = vld [vmem:[#allocation6 + $0x30] sm:$0xf]
    %v410 = vld [vmem:[#allocation6 + $0x34] sm:$0xf]
    %v411 = vld [vmem:[#allocation6 + $0x38] sm:$0xf]
    %v412 = vld [vmem:[#allocation6 + $0x3c] sm:$0xf]
    %v413 = vld [vmem:[#allocation6 + $0x40] sm:$0xf]
    %v414 = vld [vmem:[#allocation6 + $0x44] sm:$0xf]
    %v415 = vld [vmem:[#allocation6 + $0x48] sm:$0xf]
    %v416 = vld [vmem:[#allocation6 + $0x4c] sm:$0xf]
    %v417 = vld [vmem:[#allocation6 + $0x50] sm:$0xf]
    %v418 = vld [vmem:[#allocation6 + $0x54] sm:$0xf]
    %v419 = vld [vmem:[#allocation6 + $0x58] sm:$0xf]
    %v420 = vld [vmem:[#allocation6 + $0x5c] sm:$0xf]
    %v421 = vld [vmem:[#allocation6 + $0x60] sm:$0xf]
    %v422 = vld [vmem:[#allocation6 + $0x64] sm:$0xf]
    %v423 = vld [vmem:[#allocation6 + $0x68] sm:$0xf]
    %v424 = vld [vmem:[#allocation6 + $0x6c] sm:$0xf]
    %v425 = vld [vmem:[#allocation6 + $0x70] sm:$0xf]
    %v426 = vld [vmem:[#allocation6 + $0x74] sm:$0xf]
    %v427 = vld [vmem:[#allocation6 + $0x78] sm:$0xf]
    %v428 = vld [vmem:[#allocation6 + $0x7c] sm:$0xf]
    %v461 = vunpack.c.l.b16 %v397
    %v462 = vunpack.c.l.b16 %v398
    %v463 = vunpack.c.l.b16 %v399
    %v464 = vunpack.c.l.b16 %v400
    %v465 = vunpack.c.l.b16 %v401
    %v466 = vunpack.c.l.b16 %v402
    %v467 = vunpack.c.l.b16 %v403
    %v468 = vunpack.c.l.b16 %v404
    %v469 = vunpack.c.l.b16 %v405
    %v470 = vunpack.c.l.b16 %v406
    %v471 = vunpack.c.l.b16 %v407
    %v472 = vunpack.c.l.b16 %v408
    %v473 = vunpack.c.l.b16 %v409
    %v474 = vunpack.c.l.b16 %v410
    %v475 = vunpack.c.l.b16 %v411
    %v476 = vunpack.c.l.b16 %v412
    %v477 = vunpack.c.l.b16 %v413
    %v478 = vunpack.c.l.b16 %v414
    %v479 = vunpack.c.l.b16 %v415
    %v480 = vunpack.c.l.b16 %v416
    %v481 = vunpack.c.l.b16 %v417
    %v482 = vunpack.c.l.b16 %v418
    %v483 = vunpack.c.l.b16 %v419
    %v484 = vunpack.c.l.b16 %v420
    %v485 = vunpack.c.l.b16 %v421
    %v486 = vunpack.c.l.b16 %v422
    %v487 = vunpack.c.l.b16 %v423
    %v488 = vunpack.c.l.b16 %v424
    %v489 = vunpack.c.l.b16 %v425
    %v490 = vunpack.c.l.b16 %v426
    %v491 = vunpack.c.l.b16 %v427
    %v492 = vunpack.c.l.b16 %v428
    %v493 = vpack.c.b16 %v462, %v461
    %v494 = vpack.c.b16 %v464, %v463
    %v495 = vpack.c.b16 %v466, %v465
    %v496 = vpack.c.b16 %v468, %v467
    %v497 = vpack.c.b16 %v470, %v469
    %v498 = vpack.c.b16 %v472, %v471
    %v499 = vpack.c.b16 %v474, %v473
    %v500 = vpack.c.b16 %v476, %v475
    %v501 = vpack.c.b16 %v478, %v477
    %v502 = vpack.c.b16 %v480, %v479
    %v503 = vpack.c.b16 %v482, %v481
    %v504 = vpack.c.b16 %v484, %v483
    %v505 = vpack.c.b16 %v486, %v485
    %v506 = vpack.c.b16 %v488, %v487
    %v507 = vpack.c.b16 %v490, %v489
    %v508 = vpack.c.b16 %v492, %v491
    %525 = vmatpush.bf16.msra.mxu0 %v500
    %526 = vmatpush.bf16.msra.mxu0 %v499
    %527 = vmatpush.bf16.msra.mxu0 %v498
    %528 = vmatpush.bf16.msra.mxu0 %v497
    %529 = vmatpush.bf16.msra.mxu0 %v496
    %530 = vmatpush.bf16.msra.mxu0 %v495
    %531 = vmatpush.bf16.msra.mxu0 %v494
    %532 = vmatpush.bf16.msra.mxu0 %v493
    %533 = vmatmul.bf16.gmra.mxu0 %v395
    %v534 = vpop.f32.mrf.mxu0
    %v535 = vadd.f32 0.0, %v534
    %v536 = vpop.f32.mrf.mxu0
    %v537 = vadd.f32 0.0, %v536
    %538 = vdwg.mxu0
    %539 = vmatpush.bf16.msra.mxu0 %v508
    %540 = vmatpush.bf16.msra.mxu0 %v507
    %541 = vmatpush.bf16.msra.mxu0 %v506
    %542 = vmatpush.bf16.msra.mxu0 %v505
    %543 = vmatpush.bf16.msra.mxu0 %v504
    %544 = vmatpush.bf16.msra.mxu0 %v503
    %545 = vmatpush.bf16.msra.mxu0 %v502
    %546 = vmatpush.bf16.msra.mxu0 %v501
    %547 = vmatmul.bf16.gmra.mxu0 %v396
    %v548 = vpop.f32.mrf.mxu0
    %v549 = vadd.f32 %v535, %v548
    %v550 = vpop.f32.mrf.mxu0
    %v551 = vadd.f32 %v537, %v550
    %552 = vdwg.mxu0
    %v553 = vadd.f32 %v393, %v549
    %v554 = vadd.f32 %v394, %v551
    %555 = vst [vmem:[#allocation2] sm:$0xff] %v553
    %556 = vst [vmem:[#allocation2 + $0x8] sm:$0xff] %v554
    // Predicated region
    $region26: #{_ffn_call.1} parent=1 // pred_check
      %p557 = pneg %p47
    $region27: #{_ffn_call.1} parent=1 // pred_check_branch
      %559 = sbr.rel (%p557) target = $region29
    $region28: #{_ffn_call.1} parent=1 // pred_region
      %v560 = vld [vmem:[#allocation2] sm:$0xff]
      %v561 = vld [vmem:[#allocation2 + $0x8] sm:$0xff]
      %562 = vst [vmem:[#allocation8] sm:$0xff] %v560
      %563 = vst [vmem:[#allocation8 + $0x8] sm:$0xff] %v561
    $region29: #{_ffn_call.1} parent=1 // pred_fallthru
      _
    // Predicated region
    $region30: #{_ffn_call.1} parent=1 // pred_check
      _
    $region31: #{_ffn_call.1} parent=1 // pred_check_branch
      %565 = sbr.rel (0) target = $region33
    $region32: #{_ffn_call.1} parent=1 // pred_region
      %567 = vsyncadd [#allocation5], 0
      %s568 = sshll.u32 [#allocation8], 4
      %s569 = int_to_ptr.vmem [resolvable:$true] %s568
      %s570 = sshll.u32 %s3, 4
      %s571 = int_to_ptr.hbm [resolvable:$true] %s570
      %576 = dma.vmem_to_hbm [thread:$0]  %s569, 256, %s571, [#allocation5], 128, 128, 8
    $region33: #{_ffn_call.1} parent=1 // pred_fallthru
      _
    // Predicated region
    $region34: #{_ffn_call.1} parent=1 // pred_check
      _
    $region35: #{_ffn_call.1} parent=1 // pred_check_branch
      %578 = sbr.rel (0) target = $region37
    $region36: #{_ffn_call.1} parent=1 // pred_region
      %580 = dma.done [#allocation5], 256
    $region37: #{_ffn_call.1} parent=1 // pred_fallthru
      _
    %581 = vsyncpa [#allocation4], 1
    %582 = vsyncpa [#allocation7], 1
    %583 = vsyncpa [#allocation5], 1

</llo_original>
